<compile_context>
chip_gen: v7x
topology: tpu7x:2x2x1
jax: 0.10.0
libtpu: 0.0.40
codegen_flags: <defaults>
</compile_context>

<pallas_src>
import jax
import jax.numpy as jnp
from jax.experimental import pallas as pl
from jax.experimental.pallas import tpu as pltpu


def _silu(h):
    # sigmoid lowers to the TPU logistic (EUP) path; keep activation math in
    # f32 (v5e has no bf16 VPU/EUP).  If a bundle dump on v7x (which can flip
    # EUP/VPU-bound after bf16 I/O) ever shows an f32 vdiv here, swap to:
    #   h * pl.reciprocal(1.0 + jnp.exp(-h), approx=True)
    return h * jax.nn.sigmoid(h)


# ---------------------------------------------------------------------------
# Fused kernel: y = silu(W2f @ silu(W1 @ silu(W0 @ x + b0) + b1) + b2)
# x_ref: (Cin, TL)   weights: (cout_i, cin_i) f32   biases: (cout_i, 1) f32
# Pixels (TL) sit on the lane axis; channels sit on sublanes.  All
# intermediates stay in f32 vregs/VMEM; only the final store casts.
# ---------------------------------------------------------------------------
def _focus2_fused_kernel(x_ref, w0_ref, b0_ref, w1_ref, b1_ref,
                         w2_ref, b2_ref, o_ref):
    x = x_ref[...].astype(jnp.float32)
    h = jnp.dot(w0_ref[...], x, preferred_element_type=jnp.float32)
    h = _silu(h + b0_ref[...])                       # conv0 + BN + SiLU

    h = jnp.dot(w1_ref[...], h, preferred_element_type=jnp.float32)
    h = _silu(h + b1_ref[...])                       # conv1 + BN + SiLU

    y = jnp.dot(w2_ref[...], h, preferred_element_type=jnp.float32)
    y = _silu(y + b2_ref[...])                       # conv2 + BN + SiLU (concat folded)
    o_ref[...] = y.astype(o_ref.dtype)


def _pick_pixel_tile(P, N, cin, cout, in_itemsize, out_itemsize,
                     max_tile=32768, vmem_budget_bytes=24 * 1024 * 1024):
    """Largest lane-dense (multiple-of-128) pixel tile that fits a ~24 MiB
    per-step VMEM budget (double-buffered in/out blocks + f32 intermediates),
    while keeping >= ~4 grid steps for megacore / 2-TC balance."""
    per_lane = (2 * cin * in_itemsize                 # double-buffered input block
                + 2 * cout * out_itemsize             # double-buffered output block
                + (4 * cin + cout // 4 + cout) * 4)   # f32 live intermediates
    tl = min(max_tile, max(128, int(vmem_budget_bytes // per_lane)))
    tl = min(tl, P)
    if tl >= 128:
        tl = (tl // 128) * 128                        # unmasked, lane-dense stores
        while tl >= 256 and N * pl.cdiv(P, tl) < 4:
            tl = max(128, ((tl // 2) // 128) * 128)
    return max(tl, 1)


def focus2_fused(x_nchw, fused_params, *, max_tile=32768):
    """x_nchw: (N, Cin, H, W) -> (N, Cout, ceil(H/2), ceil(W/2)), NCHW.
    Output dtype follows the input dtype (use bf16 inputs for the fast path)."""
    (w0, b0), (w1, b1), (w2, b2) = fused_params
    N, cin, H, W = x_nchw.shape
    cout = w2.shape[0]
    dt = x_nchw.dtype
    itemsize = jnp.dtype(dt).itemsize

    # conv1 (k=1, s=2, p=0) only consumes pixels (::2, ::2) of conv0's output;
    # conv0 is pointwise, so subsample the input before the kernel.
    # TODO(synk): fold this ::2,::2 subsample into the kernel's input DMA
    # (even-row BlockSpec on a (N,C,H/2,2,W) view + in-kernel stride-2 lane
    # compaction) to drop this extra HBM pass; kept host-side because the
    # lane-strided load + non-128-aligned reshape is a Mosaic lowering risk.
    xd = x_nchw[:, :, ::2, ::2]
    Hd, Wd = xd.shape[2], xd.shape[3]
    P = Hd * Wd
    xd = xd.reshape(N, cin, P)

    tl = _pick_pixel_tile(P, N, cin, cout, itemsize, itemsize, max_tile=max_tile)
    n_blk = pl.cdiv(P, tl)

    # Advisory cost hint for XLA's scheduler.
    flops = 2 * N * P * (4 * cin * cin + cin * cout + (cout // 4) * cout)
    transcendentals = N * P * (4 * cin + cout // 4 + cout)
    param_bytes = sum(int(a.size) * jnp.dtype(a.dtype).itemsize
                      for a in (w0, b0, w1, b1, w2, b2))
    bytes_accessed = (N * P * cin * itemsize          # input tiles
                      + N * P * cout * itemsize       # output tiles
                      + param_bytes)

    out = pl.pallas_call(
        _focus2_fused_kernel,
        out_shape=jax.ShapeDtypeStruct((N, cout, P), dt),
        grid=(N, n_blk),
        in_specs=[
            pl.BlockSpec((None, cin, tl), lambda n, j: (n, 0, j)),
            pl.BlockSpec(w0.shape, lambda n, j: (0, 0)),
            pl.BlockSpec(b0.shape, lambda n, j: (0, 0)),
            pl.BlockSpec(w1.shape, lambda n, j: (0, 0)),
            pl.BlockSpec(b1.shape, lambda n, j: (0, 0)),
            pl.BlockSpec(w2.shape, lambda n, j: (0, 0)),
            pl.BlockSpec(b2.shape, lambda n, j: (0, 0)),
        ],
        out_specs=pl.BlockSpec((None, cout, tl), lambda n, j: (n, 0, j)),
        compiler_params=pltpu.CompilerParams(
            dimension_semantics=("parallel", "parallel"),
            vmem_limit_bytes=48 * 1024 * 1024),
        cost_estimate=pl.CostEstimate(
            flops=flops, transcendentals=transcendentals,
            bytes_accessed=bytes_accessed),
    )(xd, w0, b0, w1, b1, w2, b2)

    return out.reshape(N, cout, Hd, Wd)


focus2_forward = jax.jit(focus2_fused)


# ---------------------------------------------------------------------------
# Parameter handling
# ---------------------------------------------------------------------------
def init_focus2_raw_params(key, in_channels, out_channels):
    """Synthetic (conv weight, BN gamma/beta/mean/var) per BaseConv block."""
    dims = [(in_channels, in_channels * 4),        # conv0
            (in_channels * 4, out_channels // 4),  # conv1
            (out_channels, out_channels)]          # conv2
    params = []
    for i, (cin, cout) in enumerate(dims):
        k = jax.random.fold_in(key, i)
        kw, kg, kb, km, kv = jax.random.split(k, 5)
        w = jax.random.normal(kw, (cout, cin), jnp.float32) / jnp.sqrt(cin)
        gamma = 0.5 + jax.random.uniform(kg, (cout,), jnp.float32)
        beta = 0.1 * jax.random.normal(kb, (cout,), jnp.float32)
        mean = 0.1 * jax.random.normal(km, (cout,), jnp.float32)
        var = 0.5 + jax.random.uniform(kv, (cout,), jnp.float32)
        params.append((w, gamma, beta, mean, var))
    return params


def prepare_fused_params(raw_params, eps=1e-5):
    """Fold BN (eval) into conv weight/bias; fold the 4-way concat into w2."""
    folded = []
    for (w, gamma, beta, mean, var) in raw_params:
        s = gamma / jnp.sqrt(var + eps)
        b = beta - mean * s
        folded.append([w * s[:, None], b[:, None]])   # weight (cout,cin), bias (cout,1)
    # cat([p, p, p, p]) @ W2^T  ==  p @ (sum of the four column-blocks of W2)^T
    w2, b2 = folded[2]
    c1 = folded[1][0].shape[0]
    w2f = (w2[:, 0:c1] + w2[:, c1:2 * c1]
           + w2[:, 2 * c1:3 * c1] + w2[:, 3 * c1:4 * c1])
    folded[2][0] = w2f
    return tuple(tuple(p) for p in folded)


# ---------------------------------------------------------------------------
# Pure-JAX reference of the ORIGINAL (unfused, unfolded) Focus2 forward (f32).
# ---------------------------------------------------------------------------
def focus2_reference(x_nchw, raw_params, eps=1e-5):
    def block(x, w, gamma, beta, mean, var, stride):
        xs = x[:, :, ::stride, ::stride]             # 1x1 conv, pad 0
        y = jnp.einsum("dc,nchw->ndhw", w, xs)
        y = ((y - mean[None, :, None, None])
             * (gamma / jnp.sqrt(var + eps))[None, :, None, None]
             + beta[None, :, None, None])
        return y * jax.nn.sigmoid(y)

    p0, p1, p2 = raw_params
    x0 = block(x_nchw, *p0, stride=1)                # conv0
    p = block(x0, *p1, stride=2)                     # conv1 (applied 4x, identical)
    cat = jnp.concatenate([p, p, p, p], axis=1)
    return block(cat, *p2, stride=1)                 # conv2


if __name__ == "__main__":
    key = jax.random.PRNGKey(0)
    N, Cin, H, W = 2, 4, 16, 16
    Cout = 8  # must be divisible by 4 (Focus2 constraint)

    kx, kp = jax.random.split(key)
    x_f32 = jax.random.normal(kx, (N, Cin, H, W), jnp.float32)
    x = x_f32.astype(jnp.bfloat16)     # HBM-facing activations in bf16
    raw_params = init_focus2_raw_params(kp, Cin, Cout)
    fused_params = prepare_fused_params(raw_params)

    out = focus2_forward(x, fused_params)
    out = jax.block_until_ready(out)

    ref = focus2_reference(x.astype(jnp.float32), raw_params)
    assert out.shape == (N, Cout, H // 2, W // 2), out.shape
    assert out.dtype == jnp.bfloat16, out.dtype
    assert jnp.allclose(out.astype(jnp.float32), ref, rtol=2e-2, atol=5e-2), (
        float(jnp.max(jnp.abs(out.astype(jnp.float32) - ref))))

    print("KERNEL_OK")
</pallas_src>

<mosaic_0001>
module attributes {stable_mosaic.version = 11 : i64} {
  func.func @_focus2_fused_kernel(%arg0: i32, %arg1: i32, %arg2: memref<1x4x64xbf16, #tpu.memory_space<vmem>>, %arg3: memref<16x4xf32, #tpu.memory_space<vmem>>, %arg4: memref<16x1xf32, #tpu.memory_space<vmem>>, %arg5: memref<2x16xf32, #tpu.memory_space<vmem>>, %arg6: memref<2x1xf32, #tpu.memory_space<vmem>>, %arg7: memref<8x2xf32, #tpu.memory_space<vmem>>, %arg8: memref<8x1xf32, #tpu.memory_space<vmem>>, %arg9: memref<1x8x64xbf16, #tpu.memory_space<vmem>>) attributes {dimension_semantics = [#tpu.dimension_semantics<parallel>, #tpu.dimension_semantics<parallel>], iteration_bounds = array<i64: 2, 1>, scalar_prefetch = 0 : i64, scratch_operands = 0 : i64, tpu.core_type = #tpu.core_type<tc>, window_params = [{transform_indices = @transform_0, window_bounds = array<i64: 1, 4, 64>}, {pipeline_mode = #tpu.pipeline_mode<synchronous>, transform_indices = @transform_1, window_bounds = array<i64: 16, 4>}, {pipeline_mode = #tpu.pipeline_mode<synchronous>, transform_indices = @transform_2, window_bounds = array<i64: 16, 1>}, {pipeline_mode = #tpu.pipeline_mode<synchronous>, transform_indices = @transform_3, window_bounds = array<i64: 2, 16>}, {pipeline_mode = #tpu.pipeline_mode<synchronous>, transform_indices = @transform_4, window_bounds = array<i64: 2, 1>}, {pipeline_mode = #tpu.pipeline_mode<synchronous>, transform_indices = @transform_5, window_bounds = array<i64: 8, 2>}, {pipeline_mode = #tpu.pipeline_mode<synchronous>, transform_indices = @transform_6, window_bounds = array<i64: 8, 1>}, {transform_indices = @transform_7, window_bounds = array<i64: 1, 8, 64>}]} {
    %c0 = arith.constant 0 : index
    %c0_0 = arith.constant 0 : index
    %c0_1 = arith.constant 0 : index
    %0 = vector.load %arg2[%c0, %c0_0, %c0_1] : memref<1x4x64xbf16, #tpu.memory_space<vmem>>, vector<1x4x64xbf16>
    %1 = vector.shape_cast %0 : vector<1x4x64xbf16> to vector<4x64xbf16>
    %2 = arith.extf %1 : vector<4x64xbf16> to vector<4x64xf32>
    %c0_2 = arith.constant 0 : index
    %c0_3 = arith.constant 0 : index
    %3 = vector.load %arg3[%c0_2, %c0_3] : memref<16x4xf32, #tpu.memory_space<vmem>>, vector<16x4xf32>
    %cst = arith.constant dense<0.000000e+00> : vector<16x64xf32>
    %4 = tpu.matmul %3, %2, %cst {dimension_numbers = #tpu.dot_dimension_numbers<[1], [0], [0], [1], [0, 0, 1, 1], [], []>} : vector<16x4xf32>, vector<4x64xf32>, vector<16x64xf32> -> vector<16x64xf32>
    %c0_4 = arith.constant 0 : index
    %c0_5 = arith.constant 0 : index
    %5 = vector.load %arg4[%c0_4, %c0_5] : memref<16x1xf32, #tpu.memory_space<vmem>>, vector<16x1xf32>
    %6 = vector.broadcast %5 : vector<16x1xf32> to vector<16x64xf32>
    %7 = arith.addf %4, %6 : vector<16x64xf32>
    %8 = arith.negf %7 : vector<16x64xf32>
    %9 = math.exp %8 : vector<16x64xf32>
    %cst_6 = arith.constant 1.000000e+00 : f32
    %10 = vector.broadcast %cst_6 : f32 to vector<16x64xf32>
    %11 = arith.addf %10, %9 : vector<16x64xf32>
    %12 = arith.divf %10, %11 : vector<16x64xf32>
    %13 = arith.mulf %7, %12 : vector<16x64xf32>
    %c0_7 = arith.constant 0 : index
    %c0_8 = arith.constant 0 : index
    %14 = vector.load %arg5[%c0_7, %c0_8] : memref<2x16xf32, #tpu.memory_space<vmem>>, vector<2x16xf32>
    %cst_9 = arith.constant dense<0.000000e+00> : vector<2x64xf32>
    %15 = tpu.matmul %14, %13, %cst_9 {dimension_numbers = #tpu.dot_dimension_numbers<[1], [0], [0], [1], [0, 0, 1, 1], [], []>} : vector<2x16xf32>, vector<16x64xf32>, vector<2x64xf32> -> vector<2x64xf32>
    %c0_10 = arith.constant 0 : index
    %c0_11 = arith.constant 0 : index
    %16 = vector.load %arg6[%c0_10, %c0_11] : memref<2x1xf32, #tpu.memory_space<vmem>>, vector<2x1xf32>
    %17 = vector.broadcast %16 : vector<2x1xf32> to vector<2x64xf32>
    %18 = arith.addf %15, %17 : vector<2x64xf32>
    %19 = arith.negf %18 : vector<2x64xf32>
    %20 = math.exp %19 : vector<2x64xf32>
    %cst_12 = arith.constant 1.000000e+00 : f32
    %21 = vector.broadcast %cst_12 : f32 to vector<2x64xf32>
    %22 = arith.addf %21, %20 : vector<2x64xf32>
    %23 = arith.divf %21, %22 : vector<2x64xf32>
    %24 = arith.mulf %18, %23 : vector<2x64xf32>
    %c0_13 = arith.constant 0 : index
    %c0_14 = arith.constant 0 : index
    %25 = vector.load %arg7[%c0_13, %c0_14] : memref<8x2xf32, #tpu.memory_space<vmem>>, vector<8x2xf32>
    %cst_15 = arith.constant dense<0.000000e+00> : vector<8x64xf32>
    %26 = tpu.matmul %25, %24, %cst_15 {dimension_numbers = #tpu.dot_dimension_numbers<[1], [0], [0], [1], [0, 0, 1, 1], [], []>} : vector<8x2xf32>, vector<2x64xf32>, vector<8x64xf32> -> vector<8x64xf32>
    %c0_16 = arith.constant 0 : index
    %c0_17 = arith.constant 0 : index
    %27 = vector.load %arg8[%c0_16, %c0_17] : memref<8x1xf32, #tpu.memory_space<vmem>>, vector<8x1xf32>
    %28 = vector.broadcast %27 : vector<8x1xf32> to vector<8x64xf32>
    %29 = arith.addf %26, %28 : vector<8x64xf32>
    %30 = arith.negf %29 : vector<8x64xf32>
    %31 = math.exp %30 : vector<8x64xf32>
    %cst_18 = arith.constant 1.000000e+00 : f32
    %32 = vector.broadcast %cst_18 : f32 to vector<8x64xf32>
    %33 = arith.addf %32, %31 : vector<8x64xf32>
    %34 = arith.divf %32, %33 : vector<8x64xf32>
    %35 = arith.mulf %29, %34 : vector<8x64xf32>
    %36 = arith.truncf %35 : vector<8x64xf32> to vector<8x64xbf16>
    %c0_19 = arith.constant 0 : index
    %c0_20 = arith.constant 0 : index
    %c0_21 = arith.constant 0 : index
    %37 = vector.load %arg9[%c0_19, %c0_20, %c0_21] : memref<1x8x64xbf16, #tpu.memory_space<vmem>>, vector<1x8x64xbf16>
    %38 = vector.shape_cast %37 : vector<1x8x64xbf16> to vector<8x64xbf16>
    %39 = vector.shape_cast %36 : vector<8x64xbf16> to vector<1x8x64xbf16>
    tpu.vector_store %arg9[%c0_19, %c0_20, %c0_21], %39 {strides = array<i32>} : memref<1x8x64xbf16, #tpu.memory_space<vmem>>, vector<1x8x64xbf16>,
    return
  }
  func.func @transform_0(%arg0: i32, %arg1: i32) -> (i32, i32, i32) {
    %c0_i32 = arith.constant 0 : i32
    %c0_i32_0 = arith.constant 0 : i32
    return %arg0, %c0_i32, %arg1 : i32, i32, i32
  }
  func.func @transform_1(%arg0: i32, %arg1: i32) -> (i32, i32) {
    %c0_i32 = arith.constant 0 : i32
    %c0_i32_0 = arith.constant 0 : i32
    %c0_i32_1 = arith.constant 0 : i32
    return %c0_i32, %c0_i32_0 : i32, i32
  }
  func.func @transform_2(%arg0: i32, %arg1: i32) -> (i32, i32) {
    %c0_i32 = arith.constant 0 : i32
    %c0_i32_0 = arith.constant 0 : i32
    %c0_i32_1 = arith.constant 0 : i32
    return %c0_i32, %c0_i32_0 : i32, i32
  }
  func.func @transform_3(%arg0: i32, %arg1: i32) -> (i32, i32) {
    %c0_i32 = arith.constant 0 : i32
    %c0_i32_0 = arith.constant 0 : i32
    %c0_i32_1 = arith.constant 0 : i32
    return %c0_i32, %c0_i32_0 : i32, i32
  }
  func.func @transform_4(%arg0: i32, %arg1: i32) -> (i32, i32) {
    %c0_i32 = arith.constant 0 : i32
    %c0_i32_0 = arith.constant 0 : i32
    %c0_i32_1 = arith.constant 0 : i32
    return %c0_i32, %c0_i32_0 : i32, i32
  }
  func.func @transform_5(%arg0: i32, %arg1: i32) -> (i32, i32) {
    %c0_i32 = arith.constant 0 : i32
    %c0_i32_0 = arith.constant 0 : i32
    %c0_i32_1 = arith.constant 0 : i32
    return %c0_i32, %c0_i32_0 : i32, i32
  }
  func.func @transform_6(%arg0: i32, %arg1: i32) -> (i32, i32) {
    %c0_i32 = arith.constant 0 : i32
    %c0_i32_0 = arith.constant 0 : i32
    %c0_i32_1 = arith.constant 0 : i32
    return %c0_i32, %c0_i32_0 : i32, i32
  }
  func.func @transform_7(%arg0: i32, %arg1: i32) -> (i32, i32, i32) {
    %c0_i32 = arith.constant 0 : i32
    %c0_i32_0 = arith.constant 0 : i32
    return %arg0, %c0_i32, %arg1 : i32, i32, i32
  }
}

</mosaic_0001>

<llo_original>
// kernel: focus2_fused.1
$region0: #{focus2_fused.1}
  #allocation0 [shape = 'u32[]', space=smem, size = 0x4, offset = 0x4, fixed_abs, tag = 'smem constant byte address 0x4 - core index']
  #allocation1 [shape = 'u32[144,128]{1,0:T(1,128)}', space=vmem, size = 0x12000, scoped, tag = 'internal scratch']
  %s0 = inlined_call_operand.vmem [shape: bf16[2,4,64], index: 0, kind: input, shape index: {}]
  %s1 = inlined_call_operand.vmem [shape: f32[16,4], index: 1, kind: input, shape index: {}]
  %s2 = inlined_call_operand.vmem [shape: f32[16,1], index: 2, kind: input, shape index: {}]
  %s3 = inlined_call_operand.vmem [shape: f32[2,16], index: 3, kind: input, shape index: {}]
  %s4 = inlined_call_operand.vmem [shape: f32[2,1], index: 4, kind: input, shape index: {}]
  %s5 = inlined_call_operand.vmem [shape: f32[8,2], index: 5, kind: input, shape index: {}]
  %s6 = inlined_call_operand.vmem [shape: f32[8,1], index: 6, kind: input, shape index: {}]
  %s7 = inlined_call_operand.vmem [shape: bf16[2,8,64], index: 7, kind: output, shape index: {}]
  %s8 = sld [smem:[#allocation0]]
  $region61: #{focus2_fused.1} parent=0
    _
  %s10 = ssub.s32 1, %s8
  %s11 = scalar_select 0, %s10, %s8
  loop: start=0, step=1, limit=4
  $region2: #{focus2_fused.1} parent=0 // loop_pre_header
    _
  $region3: #{focus2_fused.1} parent=0 // loop_header
    %s13 = sphi 0, %s17
    %p14 = scmp.ge.s32.totalorder %s13, 4
    %s20 = sphi 0, %s32
    %s21 = sphi 0, %s28
    %s22 = sphi 0, %s20
    %s23 = sphi 0, %s21
    %s24 = sphi 0, %s22
    %s25 = sphi 0, %s23
    %s37 = sphi 0, %s39
    %s40 = sphi 0, %s37
    %s41 = sphi 0, %s40
    %s57 = sphi 0, %s41
    %s61 = sphi 0, %s61
    %s63 = sphi 0, %s61
    %s64 = sphi 0, %s63
    %s78 = sphi 0, %s64
    %s82 = sphi 0, %s82
    %s84 = sphi 0, %s82
    %s85 = sphi 0, %s84
    %s99 = sphi 0, %s85
    %s103 = sphi 0, %s103
    %s105 = sphi 0, %s103
    %s106 = sphi 0, %s105
    %s120 = sphi 0, %s106
    %s124 = sphi 0, %s124
    %s126 = sphi 0, %s124
    %s127 = sphi 0, %s126
    %s141 = sphi 0, %s127
    %s145 = sphi 0, %s145
    %s147 = sphi 0, %s145
    %s148 = sphi 0, %s147
    %s162 = sphi 0, %s148
    %s166 = sphi 0, %s166
    %s168 = sphi 0, %s166
    %s169 = sphi 0, %s168
    %s183 = sphi 0, %s169
    %s191 = sphi 0, %s193
    %s194 = sphi 0, %s191
    %s195 = sphi 0, %s194
    %s211 = sphi 0, %s195
  $region4: #{focus2_fused.1} parent=0 // loop_header_branch
    %16 = sbr.rel (%p14) target = $region8
  $region5: #{focus2_fused.1} parent=0 // loop_body
    %s18 = ssub.s32 %s13, 1
    %s19 = ssub.s32 %s13, 2
    %s26 = sadd.s32 1, %s21
    %p27 = scmp.ge.s32.totalorder %s26, 1
    %s28 = scalar_select %p27, 0, %s26
    %s29 = sadd.s32 1, %s20
    %s30 = scalar_select %p27, %s29, %s20
    %p31 = scmp.ge.s32.totalorder %s30, 2
    %s32 = scalar_select %p31, 0, %s30
    %s33 = ssub.s32 %s20, %s32
    %s34 = ssub.s32 %s21, %s28
    %s35 = sor.u32 %s33, %s34
    %p36 = scmp.eq.s32.totalorder %s35, 0
    %s38 = sadd.s32 %s37, 1
    %s39 = scalar_select %p36, %s37, %s38
    %p42 = pneg %p36
    %p43 = scmp.eq.s32.totalorder %s13, 1
    %p44 = por %p42, %p43
    %p45 = scmp.ne.s32.totalorder %s37, %s40
    %p46 = scmp.eq.s32.totalorder %s13, 0
    %p47 = por %p45, %p46
    %p48 = scmp.ne.s32.totalorder %s37, %s40
    %p49 = scmp.eq.s32.totalorder %s18, 1
    %p50 = por %p48, %p49
    %p51 = scmp.ne.s32.totalorder %s40, %s41
    %p52 = scmp.eq.s32.totalorder %s18, 0
    %p53 = por %p51, %p52
    %p54 = scmp.ne.s32.totalorder %s40, %s41
    %p55 = scmp.eq.s32.totalorder %s19, 1
    %p56 = por %p54, %p55
    %p58 = scmp.ne.s32.totalorder %s41, %s57
    %p59 = scmp.eq.s32.totalorder %s19, 0
    %p60 = por %p58, %p59
    %s62 = sadd.s32 %s61, 1
    %p65 = scmp.eq.s32.totalorder %s13, 1
    %p66 = scmp.ne.s32.totalorder %s61, %s63
    %p67 = scmp.eq.s32.totalorder %s13, 0
    %p68 = por %p66, %p67
    %p69 = scmp.ne.s32.totalorder %s61, %s63
    %p70 = scmp.eq.s32.totalorder %s18, 1
    %p71 = por %p69, %p70
    %p72 = scmp.ne.s32.totalorder %s63, %s64
    %p73 = scmp.eq.s32.totalorder %s18, 0
    %p74 = por %p72, %p73
    %p75 = scmp.ne.s32.totalorder %s63, %s64
    %p76 = scmp.eq.s32.totalorder %s19, 1
    %p77 = por %p75, %p76
    %p79 = scmp.ne.s32.totalorder %s64, %s78
    %p80 = scmp.eq.s32.totalorder %s19, 0
    %p81 = por %p79, %p80
    %s83 = sadd.s32 %s82, 1
    %p86 = scmp.eq.s32.totalorder %s13, 1
    %p87 = scmp.ne.s32.totalorder %s82, %s84
    %p88 = scmp.eq.s32.totalorder %s13, 0
    %p89 = por %p87, %p88
    %p90 = scmp.ne.s32.totalorder %s82, %s84
    %p91 = scmp.eq.s32.totalorder %s18, 1
    %p92 = por %p90, %p91
    %p93 = scmp.ne.s32.totalorder %s84, %s85
    %p94 = scmp.eq.s32.totalorder %s18, 0
    %p95 = por %p93, %p94
    %p96 = scmp.ne.s32.totalorder %s84, %s85
    %p97 = scmp.eq.s32.totalorder %s19, 1
    %p98 = por %p96, %p97
    %p100 = scmp.ne.s32.totalorder %s85, %s99
    %p101 = scmp.eq.s32.totalorder %s19, 0
    %p102 = por %p100, %p101
    %s104 = sadd.s32 %s103, 1
    %p107 = scmp.eq.s32.totalorder %s13, 1
    %p108 = scmp.ne.s32.totalorder %s103, %s105
    %p109 = scmp.eq.s32.totalorder %s13, 0
    %p110 = por %p108, %p109
    %p111 = scmp.ne.s32.totalorder %s103, %s105
    %p112 = scmp.eq.s32.totalorder %s18, 1
    %p113 = por %p111, %p112
    %p114 = scmp.ne.s32.totalorder %s105, %s106
    %p115 = scmp.eq.s32.totalorder %s18, 0
    %p116 = por %p114, %p115
    %p117 = scmp.ne.s32.totalorder %s105, %s106
    %p118 = scmp.eq.s32.totalorder %s19, 1
    %p119 = por %p117, %p118
    %p121 = scmp.ne.s32.totalorder %s106, %s120
    %p122 = scmp.eq.s32.totalorder %s19, 0
    %p123 = por %p121, %p122
    %s125 = sadd.s32 %s124, 1
    %p128 = scmp.eq.s32.totalorder %s13, 1
    %p129 = scmp.ne.s32.totalorder %s124, %s126
    %p130 = scmp.eq.s32.totalorder %s13, 0
    %p131 = por %p129, %p130
    %p132 = scmp.ne.s32.totalorder %s124, %s126
    %p133 = scmp.eq.s32.totalorder %s18, 1
    %p134 = por %p132, %p133
    %p135 = scmp.ne.s32.totalorder %s126, %s127
    %p136 = scmp.eq.s32.totalorder %s18, 0
    %p137 = por %p135, %p136
    %p138 = scmp.ne.s32.totalorder %s126, %s127
    %p139 = scmp.eq.s32.totalorder %s19, 1
    %p140 = por %p138, %p139
    %p142 = scmp.ne.s32.totalorder %s127, %s141
    %p143 = scmp.eq.s32.totalorder %s19, 0
    %p144 = por %p142, %p143
    %s146 = sadd.s32 %s145, 1
    %p149 = scmp.eq.s32.totalorder %s13, 1
    %p150 = scmp.ne.s32.totalorder %s145, %s147
    %p151 = scmp.eq.s32.totalorder %s13, 0
    %p152 = por %p150, %p151
    %p153 = scmp.ne.s32.totalorder %s145, %s147
    %p154 = scmp.eq.s32.totalorder %s18, 1
    %p155 = por %p153, %p154
    %p156 = scmp.ne.s32.totalorder %s147, %s148
    %p157 = scmp.eq.s32.totalorder %s18, 0
    %p158 = por %p156, %p157
    %p159 = scmp.ne.s32.totalorder %s147, %s148
    %p160 = scmp.eq.s32.totalorder %s19, 1
    %p161 = por %p159, %p160
    %p163 = scmp.ne.s32.totalorder %s148, %s162
    %p164 = scmp.eq.s32.totalorder %s19, 0
    %p165 = por %p163, %p164
    %s167 = sadd.s32 %s166, 1
    %p170 = scmp.eq.s32.totalorder %s13, 1
    %p171 = scmp.ne.s32.totalorder %s166, %s168
    %p172 = scmp.eq.s32.totalorder %s13, 0
    %p173 = por %p171, %p172
    %p174 = scmp.ne.s32.totalorder %s166, %s168
    %p175 = scmp.eq.s32.totalorder %s18, 1
    %p176 = por %p174, %p175
    %p177 = scmp.ne.s32.totalorder %s168, %s169
    %p178 = scmp.eq.s32.totalorder %s18, 0
    %p179 = por %p177, %p178
    %p180 = scmp.ne.s32.totalorder %s168, %s169
    %p181 = scmp.eq.s32.totalorder %s19, 1
    %p182 = por %p180, %p181
    %p184 = scmp.ne.s32.totalorder %s169, %s183
    %p185 = scmp.eq.s32.totalorder %s19, 0
    %p186 = por %p184, %p185
    %s187 = ssub.s32 %s20, %s32
    %s188 = ssub.s32 %s21, %s28
    %s189 = sor.u32 %s187, %s188
    %p190 = scmp.eq.s32.totalorder %s189, 0
    %s192 = sadd.s32 %s191, 1
    %s193 = scalar_select %p190, %s191, %s192
    %p196 = pneg %p190
    %p197 = scmp.eq.s32.totalorder %s13, 1
    %p198 = por %p196, %p197
    %p199 = scmp.ne.s32.totalorder %s191, %s194
    %p200 = scmp.eq.s32.totalorder %s13, 0
    %p201 = por %p199, %p200
    %p202 = scmp.ne.s32.totalorder %s191, %s194
    %p203 = scmp.eq.s32.totalorder %s18, 1
    %p204 = por %p202, %p203
    %p205 = scmp.ne.s32.totalorder %s194, %s195
    %p206 = scmp.eq.s32.totalorder %s18, 0
    %p207 = por %p205, %p206
    %p208 = scmp.ne.s32.totalorder %s194, %s195
    %p209 = scmp.eq.s32.totalorder %s19, 1
    %p210 = por %p208, %p209
    %p212 = scmp.ne.s32.totalorder %s195, %s211
    %p213 = scmp.eq.s32.totalorder %s19, 0
    %p214 = por %p212, %p213
    %p215 = scmp.le.s32.totalorder 1, %s13
    %p216 = scmp.lt.s32.totalorder %s13, 3
    %p217 = pnand %p215, %p216
    %p218 = pneg %p217
    // Predicated region
    $region9: #{focus2_fused.1} parent=5 // pred_check
      _
    $region10: #{focus2_fused.1} parent=5 // pred_check_branch
      %220 = sbr.rel (%p217) target = $region12
    $region11: #{focus2_fused.1} parent=5 // pred_region
      %s221 = ssub.s32 %s13, 1
      // Predicated region
      $region13: #{focus2_fused.1} parent=11 // pred_check
        %p222 = pneg %p74
      $region14: #{focus2_fused.1} parent=11 // pred_check_branch
        %224 = sbr.rel (%p222) target = $region16
      $region15: #{focus2_fused.1} parent=11 // pred_region
        _
      $region16: #{focus2_fused.1} parent=11 // pred_fallthru
        _
      // Predicated region
      $region17: #{focus2_fused.1} parent=11 // pred_check
        %p225 = pneg %p95
      $region18: #{focus2_fused.1} parent=11 // pred_check_branch
        %227 = sbr.rel (%p225) target = $region20
      $region19: #{focus2_fused.1} parent=11 // pred_region
        _
      $region20: #{focus2_fused.1} parent=11 // pred_fallthru
        _
      // Predicated region
      $region21: #{focus2_fused.1} parent=11 // pred_check
        %p228 = pneg %p116
      $region22: #{focus2_fused.1} parent=11 // pred_check_branch
        %230 = sbr.rel (%p228) target = $region24
      $region23: #{focus2_fused.1} parent=11 // pred_region
        _
      $region24: #{focus2_fused.1} parent=11 // pred_fallthru
        _
      // Predicated region
      $region25: #{focus2_fused.1} parent=11 // pred_check
        %p231 = pneg %p137
      $region26: #{focus2_fused.1} parent=11 // pred_check_branch
        %233 = sbr.rel (%p231) target = $region28
      $region27: #{focus2_fused.1} parent=11 // pred_region
        _
      $region28: #{focus2_fused.1} parent=11 // pred_fallthru
        _
      // Predicated region
      $region29: #{focus2_fused.1} parent=11 // pred_check
        %p234 = pneg %p158
      $region30: #{focus2_fused.1} parent=11 // pred_check_branch
        %236 = sbr.rel (%p234) target = $region32
      $region31: #{focus2_fused.1} parent=11 // pred_region
        _
      $region32: #{focus2_fused.1} parent=11 // pred_fallthru
        _
      // Predicated region
      $region33: #{focus2_fused.1} parent=11 // pred_check
        %p237 = pneg %p179
      $region34: #{focus2_fused.1} parent=11 // pred_check_branch
        %239 = sbr.rel (%p237) target = $region36
      $region35: #{focus2_fused.1} parent=11 // pred_region
        _
      $region36: #{focus2_fused.1} parent=11 // pred_fallthru
        _
    $region12: #{focus2_fused.1} parent=5 // pred_fallthru
      _
    %p240 = scmp.lt.s32.totalorder %s13, 2
    // Predicated region
    $region37: #{focus2_fused.1} parent=5 // pred_check
      %p241 = pneg %p240
    $region38: #{focus2_fused.1} parent=5 // pred_check_branch
      %243 = sbr.rel (%p241) target = $region40
    $region39: #{focus2_fused.1} parent=5 // pred_region
      // Predicated region
      $region41: #{focus2_fused.1} parent=39 // pred_check
        %p244 = pneg %p47
      $region42: #{focus2_fused.1} parent=39 // pred_check_branch
        %246 = sbr.rel (%p244) target = $region44
      $region43: #{focus2_fused.1} parent=39 // pred_region
        %p247 = scmp.lt.s32.totalorder %s20, 1
        %s248 = scalar_select %p247, %s20, 1
        %p249 = scmp.lt.s32.totalorder %s21, 0
        %s250 = scalar_select %p249, %s21, 0
        %s251 = sadd.s32 %s250, %s248
        %s252 = smul.addr %s251, 2
        %s253 = scalar_lea.vmem %s0, %s252
      $region44: #{focus2_fused.1} parent=39 // pred_fallthru
        _
    $region40: #{focus2_fused.1} parent=5 // pred_fallthru
      _
    %p254 = scmp.le.s32.totalorder 1, %s13
    %p255 = scmp.lt.s32.totalorder %s13, 3
    %p256 = pnand %p254, %p255
    %p257 = pneg %p256
    // Predicated region
    $region45: #{focus2_fused.1} parent=5 // pred_check
      _
    $region46: #{focus2_fused.1} parent=5 // pred_check_branch
      %259 = sbr.rel (%p256) target = $region48
    $region47: #{focus2_fused.1} parent=5 // pred_region
      %s260 = ssub.s32 %s13, 1
      %p261 = scmp.lt.s32.totalorder %s22, 1
      %s262 = scalar_select %p261, %s22, 1
      %p263 = scmp.lt.s32.totalorder %s23, 0
      %s264 = scalar_select %p263, %s23, 0
      %s265 = sadd.s32 %s264, %s262
      %s266 = smul.addr %s265, 2
      %s267 = scalar_lea.vmem %s0, %s266
      %p268 = pneg %p53
      %p269 = pneg %p50
      %p270 = pneg %p74
      %p271 = pneg %p71
      %p272 = pneg %p95
      %p273 = pneg %p92
      %p274 = pneg %p116
      %p275 = pneg %p113
      %p276 = pneg %p137
      %p277 = pneg %p134
      %p278 = pneg %p158
      %p279 = pneg %p155
      %p280 = pneg %p179
      %p281 = pneg %p176
      %p282 = pneg %p207
      %p283 = pneg %p204
      %p284 = scmp.lt.s32.totalorder %s22, 1
      %s285 = scalar_select %p284, %s22, 1
      %p286 = scmp.lt.s32.totalorder %s23, 0
      %s287 = scalar_select %p286, %s23, 0
      %s288 = sadd.s32 %s287, %s285
      %s289 = smul.addr %s288, 4
      %s290 = scalar_lea.vmem %s7, %s289
      %p291 = scmp.lt.s32.totalorder %s22, 1
      %s292 = scalar_select %p291, %s22, 1
      %p293 = scmp.lt.s32.totalorder %s23, 0
      %s294 = scalar_select %p293, %s23, 0
      %s295 = sadd.s32 %s294, %s292
      %s296 = smul.addr %s295, 2
      %s297 = scalar_lea.vmem %s0, %s296
      %p298 = scmp.lt.s32.totalorder %s22, 1
      %s299 = scalar_select %p298, %s22, 1
      %p300 = scmp.lt.s32.totalorder %s23, 0
      %s301 = scalar_select %p300, %s23, 0
      %s302 = sadd.s32 %s301, %s299
      %s303 = smul.addr %s302, 4
      %s304 = scalar_lea.vmem %s7, %s303
      %v305 = vld [vmem:[%s297] sm:$0x3]
      %v306 = vunpack.c.l.bf16 %v305
      %v307 = vld [vmem:[%s1] sm:$0xff]
      %v308 = vld [vmem:[%s1 + $0x8] sm:$0xff]
      %v309 = vld [vmem:[%s2] sm:$0xff]
      %v310 = vld [vmem:[%s2 + $0x8] sm:$0xff]
      %312 = vset.pattern.permute.xlu0 0
      %313 = vperm.xlu0 %312, %v309
      %v314 = vpop.permute.xlu0 %313
      %317 = vset.pattern.permute.xlu0 0
      %318 = vperm.xlu0 %317, %v310
      %v319 = vpop.permute.xlu0 %318
      %vm321 = vcmask 31744
      %v323 = vsel %vm321, %v307, 0
      %v326 = vsel %vm321, %v308, 0
      %vm328 = vcmask 1043456
      %v330 = vsel %vm328, %v306, 0
      %332 = vmatprep.subr.mxu0 0.0
      %333 = vmatpush1.msra.mxu0 %v330
      %334 = vmatprep.subr.mxu0 0.0
      %335 = vmatpush1.msra.mxu0 0.0
      %336 = vmatprep.subr.mxu0 0.0
      %337 = vmatpush1.msra.mxu0 0.0
      %338 = vmatprep.subr.mxu0 0.0
      %339 = vmatpush1.msra.mxu0 0.0
      %340 = vmatprep.subr.mxu0 0.0
      %341 = vmatpush1.msra.mxu0 0.0
      %342 = vmatprep.subr.mxu0 0.0
      %343 = vmatpush1.msra.mxu0 0.0
      %344 = vmatprep.subr.mxu0 0.0
      %345 = vmatpush1.msra.mxu0 0.0
      %346 = vmatprep.subr.mxu0 0.0
      %347 = vmatpush1.msra.mxu0 0.0
      %348 = vmatprep.subr.mxu0 0.0
      %349 = vmatpush1.msra.mxu0 0.0
      %350 = vmatprep.subr.mxu0 0.0
      %351 = vmatpush1.msra.mxu0 0.0
      %352 = vmatprep.subr.mxu0 0.0
      %353 = vmatpush1.msra.mxu0 0.0
      %354 = vmatprep.subr.mxu0 0.0
      %355 = vmatpush1.msra.mxu0 0.0
      %356 = vmatprep.subr.mxu0 0.0
      %357 = vmatpush1.msra.mxu0 0.0
      %358 = vmatprep.subr.mxu0 0.0
      %359 = vmatpush1.msra.mxu0 0.0
      %360 = vmatprep.subr.mxu0 0.0
      %361 = vmatpush1.msra.mxu0 0.0
      %362 = vmatprep.subr.mxu0 0.0
      %363 = vmatpush1.msra.mxu0 0.0
      %364 = vmatprep.subr.mxu0 0.0
      %365 = vmatpush1.msra.mxu0 0.0
      %366 = vmatprep.subr.mxu0 0.0
      %367 = vmatpush1.msra.mxu0 0.0
      %368 = vmatprep.subr.mxu0 0.0
      %369 = vmatpush1.msra.mxu0 0.0
      %370 = vmatprep.subr.mxu0 0.0
      %371 = vmatpush1.msra.mxu0 0.0
      %372 = vmatprep.subr.mxu0 0.0
      %373 = vmatpush1.msra.mxu0 0.0
      %374 = vmatprep.subr.mxu0 0.0
      %375 = vmatpush1.msra.mxu0 0.0
      %376 = vmatprep.subr.mxu0 0.0
      %377 = vmatpush1.msra.mxu0 0.0
      %378 = vmatprep.subr.mxu0 0.0
      %379 = vmatpush1.msra.mxu0 0.0
      %380 = vmatprep.subr.mxu0 0.0
      %381 = vmatpush1.msra.mxu0 0.0
      %382 = vmatprep.subr.mxu0 0.0
      %383 = vmatpush1.msra.mxu0 0.0
      %384 = vmatprep.subr.mxu0 0.0
      %385 = vmatpush1.msra.mxu0 0.0
      %386 = vmatprep.subr.mxu0 0.0
      %387 = vmatpush1.msra.mxu0 0.0
      %388 = vmatprep.subr.mxu0 0.0
      %389 = vmatpush1.msra.mxu0 0.0
      %390 = vmatprep.subr.mxu0 0.0
      %391 = vmatpush1.msra.mxu0 0.0
      %392 = vmatprep.subr.mxu0 0.0
      %393 = vmatpush1.msra.mxu0 0.0
      %394 = vmatprep.subr.mxu0 0.0
      %395 = vmatpush1.msra.mxu0 0.0
      %396 = vmatprep.mubr.f32.mxu0 0.0
      %397 = vmatmul.mubr.f32.gmra.mrb[0].mxu0 %v323
      %v398 = vpop.f32.mrb[0].mxu0
      %v399 = vadd.f32 %v314, %v398
      %v400 = vpop.f32.mrb[0].mxu0
      %401 = vmatprep.mubr.f32.mxu0 0.0
      %402 = vmatmul.mubr.f32.gmra.mrb[0].mxu0 %v326
      %v403 = vpop.f32.mrb[0].mxu0
      %v404 = vadd.f32 %v319, %v403
      %v405 = vpop.f32.mrb[0].mxu0
      %406 = vdwg.mxu0
      %v407 = vxor.u32 %v399, 2147483648
      %v408 = vxor.u32 %v404, 2147483648
      %v409 = vmul.f32 %v407, 1.442695
      %v410 = vpow.pop %v409
      %v411 = vmul.f32 %v408, 1.442695
      %v412 = vpow.pop %v411
      %v413 = vadd.f32 %v410, 1.0
      %v414 = vadd.f32 %v412, 1.0
      %v415 = vrcp.pop %v413
      %v416 = vmul.f32 1.0, %v415
      %v417 = vrcp.pop %v414
      %v418 = vmul.f32 1.0, %v417
      %v419 = vmul.f32 %v399, %v416
      %v420 = vmul.f32 %v404, %v418
      %v421 = vld [vmem:[%s3] sm:$0x3]
      %v422 = vld [vmem:[%s4] sm:$0x3]
      %424 = vset.pattern.permute.xlu0 0
      %425 = vperm.xlu0 %424, %v422
      %v426 = vpop.permute.xlu0 %425
      %vm428 = vcmask 130048
      %v430 = vsel %vm428, %v421, 0
      %432 = vmatprep.subr.mxu0 0.0
      %433 = vmatpush1.msra.mxu0 %v419
      %434 = vmatprep.subr.mxu0 0.0
      %435 = vmatpush1.msra.mxu0 %v420
      %436 = vmatprep.subr.mxu0 0.0
      %437 = vmatpush1.msra.mxu0 0.0
      %438 = vmatprep.subr.mxu0 0.0
      %439 = vmatpush1.msra.mxu0 0.0
      %440 = vmatprep.subr.mxu0 0.0
      %441 = vmatpush1.msra.mxu0 0.0
      %442 = vmatprep.subr.mxu0 0.0
      %443 = vmatpush1.msra.mxu0 0.0
      %444 = vmatprep.subr.mxu0 0.0
      %445 = vmatpush1.msra.mxu0 0.0
      %446 = vmatprep.subr.mxu0 0.0
      %447 = vmatpush1.msra.mxu0 0.0
      %448 = vmatprep.subr.mxu0 0.0
      %449 = vmatpush1.msra.mxu0 0.0
      %450 = vmatprep.subr.mxu0 0.0
      %451 = vmatpush1.msra.mxu0 0.0
      %452 = vmatprep.subr.mxu0 0.0
      %453 = vmatpush1.msra.mxu0 0.0
      %454 = vmatprep.subr.mxu0 0.0
      %455 = vmatpush1.msra.mxu0 0.0
      %456 = vmatprep.subr.mxu0 0.0
      %457 = vmatpush1.msra.mxu0 0.0
      %458 = vmatprep.subr.mxu0 0.0
      %459 = vmatpush1.msra.mxu0 0.0
      %460 = vmatprep.subr.mxu0 0.0
      %461 = vmatpush1.msra.mxu0 0.0
      %462 = vmatprep.subr.mxu0 0.0
      %463 = vmatpush1.msra.mxu0 0.0
      %464 = vmatprep.subr.mxu0 0.0
      %465 = vmatpush1.msra.mxu0 0.0
      %466 = vmatprep.subr.mxu0 0.0
      %467 = vmatpush1.msra.mxu0 0.0
      %468 = vmatprep.subr.mxu0 0.0
      %469 = vmatpush1.msra.mxu0 0.0
      %470 = vmatprep.subr.mxu0 0.0
      %471 = vmatpush1.msra.mxu0 0.0
      %472 = vmatprep.subr.mxu0 0.0
      %473 = vmatpush1.msra.mxu0 0.0
      %474 = vmatprep.subr.mxu0 0.0
      %475 = vmatpush1.msra.mxu0 0.0
      %476 = vmatprep.subr.mxu0 0.0
      %477 = vmatpush1.msra.mxu0 0.0
      %478 = vmatprep.subr.mxu0 0.0
      %479 = vmatpush1.msra.mxu0 0.0
      %480 = vmatprep.subr.mxu0 0.0
      %481 = vmatpush1.msra.mxu0 0.0
      %482 = vmatprep.subr.mxu0 0.0
      %483 = vmatpush1.msra.mxu0 0.0
      %484 = vmatprep.subr.mxu0 0.0
      %485 = vmatpush1.msra.mxu0 0.0
      %486 = vmatprep.subr.mxu0 0.0
      %487 = vmatpush1.msra.mxu0 0.0
      %488 = vmatprep.subr.mxu0 0.0
      %489 = vmatpush1.msra.mxu0 0.0
      %490 = vmatprep.subr.mxu0 0.0
      %491 = vmatpush1.msra.mxu0 0.0
      %492 = vmatprep.subr.mxu0 0.0
      %493 = vmatpush1.msra.mxu0 0.0
      %494 = vmatprep.subr.mxu0 0.0
      %495 = vmatpush1.msra.mxu0 0.0
      %496 = vmatprep.mubr.f32.mxu0 0.0
      %497 = vmatmul.mubr.f32.gmra.mrb[0].mxu0 %v430
      %v498 = vpop.f32.mrb[0].mxu0
      %v499 = vadd.f32 %v426, %v498
      %v500 = vpop.f32.mrb[0].mxu0
      %501 = vdwg.mxu0
      %v502 = vxor.u32 %v499, 2147483648
      %v503 = vmul.f32 %v502, 1.442695
      %v504 = vpow.pop %v503
      %v505 = vadd.f32 %v504, 1.0
      %v506 = vrcp.pop %v505
      %v507 = vmul.f32 1.0, %v506
      %v508 = vmul.f32 %v499, %v507
      %v509 = vld [vmem:[%s5] sm:$0xff]
      %v510 = vld [vmem:[%s6] sm:$0xff]
      %512 = vset.pattern.permute.xlu0 0
      %513 = vperm.xlu0 %512, %v510
      %v514 = vpop.permute.xlu0 %513
      %vm516 = vcmask 15360
      %v518 = vsel %vm516, %v509, 0
      %vm520 = vcmask 1041408
      %v522 = vsel %vm520, %v508, 0
      %524 = vmatprep.subr.mxu0 0.0
      %525 = vmatpush1.msra.mxu0 %v522
      %526 = vmatprep.subr.mxu0 0.0
      %527 = vmatpush1.msra.mxu0 0.0
      %528 = vmatprep.subr.mxu0 0.0
      %529 = vmatpush1.msra.mxu0 0.0
      %530 = vmatprep.subr.mxu0 0.0
      %531 = vmatpush1.msra.mxu0 0.0
      %532 = vmatprep.subr.mxu0 0.0
      %533 = vmatpush1.msra.mxu0 0.0
      %534 = vmatprep.subr.mxu0 0.0
      %535 = vmatpush1.msra.mxu0 0.0
      %536 = vmatprep.subr.mxu0 0.0
      %537 = vmatpush1.msra.mxu0 0.0
      %538 = vmatprep.subr.mxu0 0.0
      %539 = vmatpush1.msra.mxu0 0.0
      %540 = vmatprep.subr.mxu0 0.0
      %541 = vmatpush1.msra.mxu0 0.0
      %542 = vmatprep.subr.mxu0 0.0
      %543 = vmatpush1.msra.mxu0 0.0
      %544 = vmatprep.subr.mxu0 0.0
      %545 = vmatpush1.msra.mxu0 0.0
      %546 = vmatprep.subr.mxu0 0.0
      %547 = vmatpush1.msra.mxu0 0.0
      %548 = vmatprep.subr.mxu0 0.0
      %549 = vmatpush1.msra.mxu0 0.0
      %550 = vmatprep.subr.mxu0 0.0
      %551 = vmatpush1.msra.mxu0 0.0
      %552 = vmatprep.subr.mxu0 0.0
      %553 = vmatpush1.msra.mxu0 0.0
      %554 = vmatprep.subr.mxu0 0.0
      %555 = vmatpush1.msra.mxu0 0.0
      %556 = vmatprep.subr.mxu0 0.0
      %557 = vmatpush1.msra.mxu0 0.0
      %558 = vmatprep.subr.mxu0 0.0
      %559 = vmatpush1.msra.mxu0 0.0
      %560 = vmatprep.subr.mxu0 0.0
      %561 = vmatpush1.msra.mxu0 0.0
      %562 = vmatprep.subr.mxu0 0.0
      %563 = vmatpush1.msra.mxu0 0.0
      %564 = vmatprep.subr.mxu0 0.0
      %565 = vmatpush1.msra.mxu0 0.0
      %566 = vmatprep.subr.mxu0 0.0
      %567 = vmatpush1.msra.mxu0 0.0
      %568 = vmatprep.subr.mxu0 0.0
      %569 = vmatpush1.msra.mxu0 0.0
      %570 = vmatprep.subr.mxu0 0.0
      %571 = vmatpush1.msra.mxu0 0.0
      %572 = vmatprep.subr.mxu0 0.0
      %573 = vmatpush1.msra.mxu0 0.0
      %574 = vmatprep.subr.mxu0 0.0
      %575 = vmatpush1.msra.mxu0 0.0
      %576 = vmatprep.subr.mxu0 0.0
      %577 = vmatpush1.msra.mxu0 0.0
      %578 = vmatprep.subr.mxu0 0.0
      %579 = vmatpush1.msra.mxu0 0.0
      %580 = vmatprep.subr.mxu0 0.0
      %581 = vmatpush1.msra.mxu0 0.0
      %582 = vmatprep.subr.mxu0 0.0
      %583 = vmatpush1.msra.mxu0 0.0
      %584 = vmatprep.subr.mxu0 0.0
      %585 = vmatpush1.msra.mxu0 0.0
      %586 = vmatprep.subr.mxu0 0.0
      %587 = vmatpush1.msra.mxu0 0.0
      %588 = vmatprep.mubr.f32.mxu0 0.0
      %589 = vmatmul.mubr.f32.gmra.mrb[0].mxu0 %v518
      %v590 = vpop.f32.mrb[0].mxu0
      %v591 = vadd.f32 %v514, %v590
      %v592 = vpop.f32.mrb[0].mxu0
      %593 = vdwg.mxu0
      %v594 = vxor.u32 %v591, 2147483648
      %v595 = vmul.f32 %v594, 1.442695
      %v596 = vpow.pop %v595
      %v597 = vadd.f32 %v596, 1.0
      %v598 = vrcp.pop %v597
      %v599 = vmul.f32 1.0, %v598
      %v600 = vmul.f32 %v591, %v599
      %v601 = vpack.c.bf16 %v600, %v600
      %vm602 = vcmask 519168
      %603 = vst.msk [vmem:[%s304] sm:$0xf] %vm602, %v601
      %p604 = scmp.lt.s32.totalorder %s22, 1
      %s605 = scalar_select %p604, %s22, 1
      %p606 = scmp.lt.s32.totalorder %s23, 0
      %s607 = scalar_select %p606, %s23, 0
      %s608 = sadd.s32 %s607, %s605
      %s609 = smul.addr %s608, 4
      %s610 = scalar_lea.vmem %s7, %s609
      // Predicated region
      $region49: #{focus2_fused.1} parent=47 // pred_check
        %p611 = pneg %p204
      $region50: #{focus2_fused.1} parent=47 // pred_check_branch
        %613 = sbr.rel (%p611) target = $region52
      $region51: #{focus2_fused.1} parent=47 // pred_region
        _
      $region52: #{focus2_fused.1} parent=47 // pred_fallthru
        _
    $region48: #{focus2_fused.1} parent=5 // pred_fallthru
      _
    %p614 = scmp.le.s32.totalorder 2, %s13
    // Predicated region
    $region53: #{focus2_fused.1} parent=5 // pred_check
      %p615 = pneg %p614
    $region54: #{focus2_fused.1} parent=5 // pred_check_branch
      %617 = sbr.rel (%p615) target = $region56
    $region55: #{focus2_fused.1} parent=5 // pred_region
      %s618 = ssub.s32 %s13, 2
      // Predicated region
      $region57: #{focus2_fused.1} parent=55 // pred_check
        %p619 = pneg %p210
      $region58: #{focus2_fused.1} parent=55 // pred_check_branch
        %621 = sbr.rel (%p619) target = $region60
      $region59: #{focus2_fused.1} parent=55 // pred_region
        %p622 = scmp.lt.s32.totalorder %s24, 1
        %s623 = scalar_select %p622, %s24, 1
        %p624 = scmp.lt.s32.totalorder %s25, 0
        %s625 = scalar_select %p624, %s25, 0
        %s626 = sadd.s32 %s625, %s623
        %s627 = smul.addr %s626, 4
        %s628 = scalar_lea.vmem %s7, %s627
      $region60: #{focus2_fused.1} parent=55 // pred_fallthru
        _
    $region56: #{focus2_fused.1} parent=5 // pred_fallthru
      _
  $region6: #{focus2_fused.1} parent=0 // loop_footer
    %s17 = sadd.s32 1, %s13
  $region7: #{focus2_fused.1} parent=0 // loop_footer_branch
    %12 = sbr.rel target = $region3
  $region8: #{focus2_fused.1} parent=0 // loop_exit
    _

</llo_original>
